<compile_context>
chip_gen: v5e
topology: v5e:2x2
jax: 0.10.0
libtpu: 0.0.40
codegen_flags: <defaults>
</compile_context>

<pallas_src>
import jax
import jax.numpy as jnp
from jax.experimental import pallas as pl
from jax.experimental.pallas import tpu as pltpu


def _round_up(x: int, m: int) -> int:
    return ((x + m - 1) // m) * m


def _make_gating_kernel(top_k: int):
    def gating_kernel(x_ref, w_ref, b_ref, idx_ref, val_ref):
        x = x_ref[...]          # [TILE_N, D]
        w = w_ref[...]          # [E, D]  (nn.Linear weight layout)
        b = b_ref[...]          # [E, 1]

        # scores[e, n] = sum_d w[e, d] * x[n, d] + b[e]  ->  [E, TILE_N]
        # (A @ B^T contraction on the lane-dense last dims of both operands,
        #  tokens land on lanes / experts on sublanes.)
        scores = jax.lax.dot_general(
            w, x, (((1,), (1,)), ((), ())),
            preferred_element_type=jnp.float32,
        ) + b

        # Softmax over the (tiny, sublane) expert axis.
        m = jnp.max(scores, axis=0, keepdims=True)          # [1, TILE_N]
        ex = jnp.exp(scores - m)                             # [E, TILE_N]
        denom = jnp.sum(ex, axis=0, keepdims=True)           # [1, TILE_N]
        # Reciprocal-multiply instead of divide (EUP slot).  approx=True is
        # available for extra speed if ~1e-3 accuracy on the probs is OK.
        inv = pl.reciprocal(denom, approx=False)
        probs = ex * inv                                     # [E, TILE_N]

        num_e = probs.shape[0]
        row_ids = jax.lax.broadcasted_iota(jnp.int32, probs.shape, 0)

        # Iterative top-k over the expert (sublane) axis; k is static so the
        # Python loop unrolls.  Results are stored straight into the output
        # refs as lane-dense [1, TILE_N] rows.
        cur = probs
        for k in range(top_k):
            v = jnp.max(cur, axis=0, keepdims=True)          # [1, TILE_N]
            is_max = cur == v
            # lowest index achieving the max (matches torch/lax tie order)
            idx = jnp.min(jnp.where(is_max, row_ids, num_e),
                          axis=0, keepdims=True)             # [1, TILE_N] i32
            val_ref[pl.ds(k, 1), :] = v
            idx_ref[pl.ds(k, 1), :] = idx
            # mask out the selected expert for the next round
            cur = jnp.where(row_ids == idx, -jnp.inf, cur)

    return gating_kernel


def topk_gating(x, w, b, *, top_k: int = 2, tile_n: int = 512):
    """MoE top-k gating.

    x: [N, D] activations, w: [E, D] gate weight (nn.Linear layout), b: [E].
    Returns (top_k_indices int32 [N, top_k], top_k_values float32 [N, top_k]).
    """
    n, d = x.shape
    e = w.shape[0]

    # Tokens land on the 128-wide lane axis, so TILE_N must be a multiple of
    # 128.  Shrink for tiny N.  For very large D, keep the double-buffered x
    # tiles (2 * TILE_N * D * itemsize) + W well under the scoped VMEM limit
    # (v7x: 64 MiB physical / 32 MiB default scoped; v5e/v6e: 128 MiB) --
    # lower tile_n or raise vmem_limit_bytes via pltpu.CompilerParams.
    tile_n = min(tile_n, _round_up(n, 128))
    n_pad = _round_up(n, tile_n)
    if n_pad != n:
        x = jnp.pad(x, ((0, n_pad - n), (0, 0)))   # padded rows stripped below
    b2 = b.reshape(e, 1).astype(jnp.float32)

    grid = (n_pad // tile_n,)
    kernel = _make_gating_kernel(top_k)

    bytes_accessed = int(
        n_pad * d * x.dtype.itemsize        # x read (dominant)
        + e * d * w.dtype.itemsize + e * 4  # resident gate params
        + 2 * top_k * n_pad * 4             # outputs
    )
    cost = pl.CostEstimate(
        flops=int(2 * n_pad * d * e + 8 * n_pad * e),
        transcendentals=int(n_pad * e),
        bytes_accessed=bytes_accessed,
    )

    idx_t, val_t = pl.pallas_call(
        kernel,
        grid=grid,
        in_specs=[
            pl.BlockSpec((tile_n, d), lambda i: (i, 0),
                         memory_space=pltpu.MemorySpace.VMEM),
            pl.BlockSpec((e, d), lambda i: (0, 0),
                         memory_space=pltpu.MemorySpace.VMEM),
            pl.BlockSpec((e, 1), lambda i: (0, 0),
                         memory_space=pltpu.MemorySpace.VMEM),
        ],
        out_specs=(
            pl.BlockSpec((top_k, tile_n), lambda i: (0, i),
                         memory_space=pltpu.MemorySpace.VMEM),
            pl.BlockSpec((top_k, tile_n), lambda i: (0, i),
                         memory_space=pltpu.MemorySpace.VMEM),
        ),
        out_shape=(
            jax.ShapeDtypeStruct((top_k, n_pad), jnp.int32),
            jax.ShapeDtypeStruct((top_k, n_pad), jnp.float32),
        ),
        compiler_params=pltpu.CompilerParams(
            dimension_semantics=("parallel",),   # megacore split on v7x
        ),
        cost_estimate=cost,
    )(x, w, b2)

    # Tiny layout fix-up outside the kernel: [top_k, N_pad] -> [N, top_k].
    return idx_t[:, :n].T, val_t[:, :n].T


if __name__ == "__main__":
    # Small shapes consistent with the module's forward.
    N, INPUT_DIM, NUM_EXPERTS, TOP_K = 8, 32, 8, 2

    key = jax.random.PRNGKey(0)
    kx, kw, kb = jax.random.split(key, 3)

    x = jax.random.normal(kx, (N, INPUT_DIM), dtype=jnp.float32)
    # nn.Linear(input_dim, num_experts): weight [E, D], bias [E]
    bound = 1.0 / (INPUT_DIM ** 0.5)
    w = jax.random.uniform(kw, (NUM_EXPERTS, INPUT_DIM), jnp.float32, -bound, bound)
    b = jax.random.uniform(kb, (NUM_EXPERTS,), jnp.float32, -bound, bound)

    def ref(xv):
        scores = xv @ w.T + b
        probs = jax.nn.softmax(scores, axis=1)
        v, i = jax.lax.top_k(probs, TOP_K)
        return i.astype(jnp.int32), v

    # Case 1: tiny batch (single tile after padding to 128 lanes).
    top_idx, top_val = jax.block_until_ready(topk_gating(x, w, b, top_k=TOP_K))
    ref_idx, ref_val = ref(x)
    assert jnp.array_equal(top_idx, ref_idx), "top-k indices mismatch"
    assert jnp.allclose(top_val, ref_val, atol=1e-5), "top-k values mismatch"

    # Case 2: exercises the multi-tile grid and the N % TILE_N != 0 tail path.
    N2 = 300
    x2 = jax.random.normal(jax.random.PRNGKey(1), (N2, INPUT_DIM), dtype=jnp.float32)
    idx2, val2 = jax.block_until_ready(
        topk_gating(x2, w, b, top_k=TOP_K, tile_n=128))
    ref_idx2, ref_val2 = ref(x2)
    assert jnp.array_equal(idx2, ref_idx2), "top-k indices mismatch (tiled)"
    assert jnp.allclose(val2, ref_val2, atol=1e-5), "top-k values mismatch (tiled)"

    print("KERNEL_OK")
</pallas_src>

<mosaic_0001>
module attributes {stable_mosaic.version = 11 : i64} {
  func.func @gating_kernel(%arg0: i32, %arg1: memref<128x32xf32, #tpu.memory_space<vmem>>, %arg2: memref<8x32xf32, #tpu.memory_space<vmem>>, %arg3: memref<8x1xf32, #tpu.memory_space<vmem>>, %arg4: memref<2x128xi32, #tpu.memory_space<vmem>>, %arg5: memref<2x128xf32, #tpu.memory_space<vmem>>) attributes {dimension_semantics = [#tpu.dimension_semantics<parallel>], iteration_bounds = array<i64: 1>, scalar_prefetch = 0 : i64, scratch_operands = 0 : i64, tpu.core_type = #tpu.core_type<tc>, window_params = [{transform_indices = @transform_0, window_bounds = array<i64: 128, 32>}, {pipeline_mode = #tpu.pipeline_mode<synchronous>, transform_indices = @transform_1, window_bounds = array<i64: 8, 32>}, {pipeline_mode = #tpu.pipeline_mode<synchronous>, transform_indices = @transform_2, window_bounds = array<i64: 8, 1>}, {transform_indices = @transform_3, window_bounds = array<i64: 2, 128>}, {transform_indices = @transform_4, window_bounds = array<i64: 2, 128>}]} {
    %c0 = arith.constant 0 : index
    %c0_0 = arith.constant 0 : index
    %0 = vector.load %arg1[%c0, %c0_0] : memref<128x32xf32, #tpu.memory_space<vmem>>, vector<128x32xf32>
    %c0_1 = arith.constant 0 : index
    %c0_2 = arith.constant 0 : index
    %1 = vector.load %arg2[%c0_1, %c0_2] : memref<8x32xf32, #tpu.memory_space<vmem>>, vector<8x32xf32>
    %c0_3 = arith.constant 0 : index
    %c0_4 = arith.constant 0 : index
    %2 = vector.load %arg3[%c0_3, %c0_4] : memref<8x1xf32, #tpu.memory_space<vmem>>, vector<8x1xf32>
    %cst = arith.constant dense<0.000000e+00> : vector<8x128xf32>
    %3 = tpu.matmul %1, %0, %cst {dimension_numbers = #tpu.dot_dimension_numbers<[1], [1], [0], [0], [0, 0, 1, 0], [], []>} : vector<8x32xf32>, vector<128x32xf32>, vector<8x128xf32> -> vector<8x128xf32>
    %4 = vector.broadcast %2 : vector<8x1xf32> to vector<8x128xf32>
    %5 = arith.addf %3, %4 : vector<8x128xf32>
    %cst_5 = arith.constant dense<0xFF800000> : vector<128xf32>
    %6 = vector.multi_reduction <maximumf>, %5, %cst_5 [0] : vector<8x128xf32> to vector<128xf32>
    %7 = vector.shape_cast %6 : vector<128xf32> to vector<1x128xf32>
    %8 = vector.broadcast %7 : vector<1x128xf32> to vector<8x128xf32>
    %9 = arith.subf %5, %8 : vector<8x128xf32>
    %10 = math.exp %9 : vector<8x128xf32>
    %cst_6 = arith.constant dense<0.000000e+00> : vector<128xf32>
    %11 = vector.multi_reduction <add>, %10, %cst_6 [0] : vector<8x128xf32> to vector<128xf32>
    %12 = vector.shape_cast %11 : vector<128xf32> to vector<1x128xf32>
    %13 = tpu.reciprocal %12 : vector<1x128xf32> -> vector<1x128xf32>
    %14 = vector.broadcast %13 : vector<1x128xf32> to vector<8x128xf32>
    %15 = arith.mulf %10, %14 : vector<8x128xf32>
    %16 = tpu.iota {dimensions = array<i32: 0>} : vector<8x128xi32>
    %cst_7 = arith.constant dense<0xFF800000> : vector<128xf32>
    %17 = vector.multi_reduction <maximumf>, %15, %cst_7 [0] : vector<8x128xf32> to vector<128xf32>
    %18 = vector.shape_cast %17 : vector<128xf32> to vector<1x128xf32>
    %19 = vector.broadcast %18 : vector<1x128xf32> to vector<8x128xf32>
    %20 = arith.cmpf oeq, %15, %19 : vector<8x128xf32>
    %c8_i32 = arith.constant 8 : i32
    %21 = vector.broadcast %c8_i32 : i32 to vector<8x128xi32>
    %22 = arith.select %20, %16, %21 : vector<8x128xi1>, vector<8x128xi32>
    %cst_8 = arith.constant dense<2147483647> : vector<128xi32>
    %23 = vector.multi_reduction <minsi>, %22, %cst_8 [0] : vector<8x128xi32> to vector<128xi32>
    %24 = vector.shape_cast %23 : vector<128xi32> to vector<1x128xi32>
    %c0_9 = arith.constant 0 : index
    %c0_10 = arith.constant 0 : index
    %25 = vector.load %arg5[%c0_9, %c0_10] : memref<2x128xf32, #tpu.memory_space<vmem>>, vector<1x128xf32>
    tpu.vector_store %arg5[%c0_9, %c0_10], %18 {strides = array<i32>} : memref<2x128xf32, #tpu.memory_space<vmem>>, vector<1x128xf32>,
    %c0_11 = arith.constant 0 : index
    %c0_12 = arith.constant 0 : index
    %26 = vector.load %arg4[%c0_11, %c0_12] : memref<2x128xi32, #tpu.memory_space<vmem>>, vector<1x128xi32>
    tpu.vector_store %arg4[%c0_11, %c0_12], %24 {strides = array<i32>} : memref<2x128xi32, #tpu.memory_space<vmem>>, vector<1x128xi32>,
    %27 = vector.broadcast %24 : vector<1x128xi32> to vector<8x128xi32>
    %28 = arith.cmpi eq, %16, %27 : vector<8x128xi32>
    %cst_13 = arith.constant 0xFF800000 : f32
    %29 = vector.broadcast %cst_13 : f32 to vector<8x128xf32>
    %30 = arith.select %28, %29, %15 : vector<8x128xi1>, vector<8x128xf32>
    %cst_14 = arith.constant dense<0xFF800000> : vector<128xf32>
    %31 = vector.multi_reduction <maximumf>, %30, %cst_14 [0] : vector<8x128xf32> to vector<128xf32>
    %32 = vector.shape_cast %31 : vector<128xf32> to vector<1x128xf32>
    %33 = vector.broadcast %32 : vector<1x128xf32> to vector<8x128xf32>
    %34 = arith.cmpf oeq, %30, %33 : vector<8x128xf32>
    %c8_i32_15 = arith.constant 8 : i32
    %35 = vector.broadcast %c8_i32_15 : i32 to vector<8x128xi32>
    %36 = arith.select %34, %16, %35 : vector<8x128xi1>, vector<8x128xi32>
    %cst_16 = arith.constant dense<2147483647> : vector<128xi32>
    %37 = vector.multi_reduction <minsi>, %36, %cst_16 [0] : vector<8x128xi32> to vector<128xi32>
    %38 = vector.shape_cast %37 : vector<128xi32> to vector<1x128xi32>
    %c1 = arith.constant 1 : index
    %c0_17 = arith.constant 0 : index
    %39 = vector.load %arg5[%c1, %c0_17] : memref<2x128xf32, #tpu.memory_space<vmem>>, vector<1x128xf32>
    tpu.vector_store %arg5[%c1, %c0_17], %32 {strides = array<i32>} : memref<2x128xf32, #tpu.memory_space<vmem>>, vector<1x128xf32>,
    %c1_18 = arith.constant 1 : index
    %c0_19 = arith.constant 0 : index
    %40 = vector.load %arg4[%c1_18, %c0_19] : memref<2x128xi32, #tpu.memory_space<vmem>>, vector<1x128xi32>
    tpu.vector_store %arg4[%c1_18, %c0_19], %38 {strides = array<i32>} : memref<2x128xi32, #tpu.memory_space<vmem>>, vector<1x128xi32>,
    return
  }
  func.func @transform_0(%arg0: i32) -> (i32, i32) {
    %c0_i32 = arith.constant 0 : i32
    %c0_i32_0 = arith.constant 0 : i32
    return %arg0, %c0_i32 : i32, i32
  }
  func.func @transform_1(%arg0: i32) -> (i32, i32) {
    %c0_i32 = arith.constant 0 : i32
    %c0_i32_0 = arith.constant 0 : i32
    %c0_i32_1 = arith.constant 0 : i32
    return %c0_i32, %c0_i32_0 : i32, i32
  }
  func.func @transform_2(%arg0: i32) -> (i32, i32) {
    %c0_i32 = arith.constant 0 : i32
    %c0_i32_0 = arith.constant 0 : i32
    %c0_i32_1 = arith.constant 0 : i32
    return %c0_i32, %c0_i32_0 : i32, i32
  }
  func.func @transform_3(%arg0: i32) -> (i32, i32) {
    %c0_i32 = arith.constant 0 : i32
    %c0_i32_0 = arith.constant 0 : i32
    return %c0_i32, %arg0 : i32, i32
  }
  func.func @transform_4(%arg0: i32) -> (i32, i32) {
    %c0_i32 = arith.constant 0 : i32
    %c0_i32_0 = arith.constant 0 : i32
    return %c0_i32, %arg0 : i32, i32
  }
}

</mosaic_0001>

<llo_original>
// kernel: tpu_custom_call.1
$region0: #{tpu_custom_call.1}
  #allocation0 [shape = 'u32[]', space=smem, size = 0x4, offset = 0x4, fixed_abs, tag = 'smem constant byte address 0x4 - core index']
  #allocation1 [shape = 'u32[72,128]{1,0:T(1,128)}', space=vmem, size = 0x9000, scoped, tag = 'internal scratch']
  %s0 = inlined_call_operand.vmem [shape: f32[128,32], index: 0, kind: input, shape index: {}]
  %s1 = inlined_call_operand.vmem [shape: f32[8,32], index: 1, kind: input, shape index: {}]
  %s2 = inlined_call_operand.vmem [shape: f32[8,1], index: 2, kind: input, shape index: {}]
  %s3 = inlined_call_operand.hbm [shape: s32[2,128], index: 3, kind: output, shape index: {0}]
  %s4 = inlined_call_operand.hbm [shape: f32[2,128], index: 4, kind: output, shape index: {1}]
  %5 = xla_tuple %s3, %s4
  %s6 = sld [smem:[#allocation0]]
  $region30: #{tpu_custom_call.1} parent=0
    _
  %s8 = ssub.s32 1, %s6
  %s9 = scalar_select 0, %s8, %s6
  $region1: #{tpu_custom_call.1} parent=0
    #allocation2 [shape = 'u8[1024]{0}', space=vmem, size = 0x400, scoped, tag = 'output window, operand 0, single buffered']
    #allocation3 [shape = 's32[1]{0}', space=sflag, size = 0x4, scoped, tag = 'scoped memory for tpu_custom_call.1']
    #allocation4 [shape = 'u8[1024]{0}', space=vmem, size = 0x400, scoped, tag = 'output window, operand 1, single buffered']
    #allocation5 [shape = 's32[1]{0}', space=sflag, size = 0x4, scoped, tag = 'scoped memory for tpu_custom_call.1']
    %10 = vsyncpa [#allocation3], 0
    %11 = vsyncpa [#allocation5], 0
    // Predicated region
    $region2: #{tpu_custom_call.1} parent=1 // pred_check
      _
    $region3: #{tpu_custom_call.1} parent=1 // pred_check_branch
      %13 = sbr.rel (0) target = $region5
    $region4: #{tpu_custom_call.1} parent=1 // pred_region
      _
    $region5: #{tpu_custom_call.1} parent=1 // pred_fallthru
      _
    // Predicated region
    $region6: #{tpu_custom_call.1} parent=1 // pred_check
      _
    $region7: #{tpu_custom_call.1} parent=1 // pred_check_branch
      %15 = sbr.rel (0) target = $region9
    $region8: #{tpu_custom_call.1} parent=1 // pred_region
      _
    $region9: #{tpu_custom_call.1} parent=1 // pred_fallthru
      _
    // Predicated region
    $region10: #{tpu_custom_call.1} parent=1 // pred_check
      _
    $region11: #{tpu_custom_call.1} parent=1 // pred_check_branch
      %17 = sbr.rel (0) target = $region13
    $region12: #{tpu_custom_call.1} parent=1 // pred_region
      _
    $region13: #{tpu_custom_call.1} parent=1 // pred_fallthru
      _
    %v18 = vld [vmem:[%s0] sm:$0xff]
    %v19 = vld [vmem:[%s0 + $0x8] sm:$0xff]
    %v20 = vld [vmem:[%s0 + $0x10] sm:$0xff]
    %v21 = vld [vmem:[%s0 + $0x18] sm:$0xff]
    %v22 = vld [vmem:[%s0 + $0x20] sm:$0xff]
    %v23 = vld [vmem:[%s0 + $0x28] sm:$0xff]
    %v24 = vld [vmem:[%s0 + $0x30] sm:$0xff]
    %v25 = vld [vmem:[%s0 + $0x38] sm:$0xff]
    %v26 = vld [vmem:[%s0 + $0x40] sm:$0xff]
    %v27 = vld [vmem:[%s0 + $0x48] sm:$0xff]
    %v28 = vld [vmem:[%s0 + $0x50] sm:$0xff]
    %v29 = vld [vmem:[%s0 + $0x58] sm:$0xff]
    %v30 = vld [vmem:[%s0 + $0x60] sm:$0xff]
    %v31 = vld [vmem:[%s0 + $0x68] sm:$0xff]
    %v32 = vld [vmem:[%s0 + $0x70] sm:$0xff]
    %v33 = vld [vmem:[%s0 + $0x78] sm:$0xff]
    %v34 = vld [vmem:[%s1] sm:$0xff]
    %v35 = vld [vmem:[%s2] sm:$0xff]
    %37 = vset.pattern.permute.xlu0 0
    %38 = vperm.xlu0 %37, %v35
    %v39 = vpop.permute.xlu0 %38
    %vm41 = vcmask 261120
    %v43 = vsel %vm41, %v34, 0
    %v46 = vsel %vm41, %v18, 0
    %v49 = vsel %vm41, %v19, 0
    %v52 = vsel %vm41, %v20, 0
    %v55 = vsel %vm41, %v21, 0
    %v58 = vsel %vm41, %v22, 0
    %v61 = vsel %vm41, %v23, 0
    %v64 = vsel %vm41, %v24, 0
    %v67 = vsel %vm41, %v25, 0
    %v70 = vsel %vm41, %v26, 0
    %v73 = vsel %vm41, %v27, 0
    %v76 = vsel %vm41, %v28, 0
    %v79 = vsel %vm41, %v29, 0
    %v82 = vsel %vm41, %v30, 0
    %v85 = vsel %vm41, %v31, 0
    %v88 = vsel %vm41, %v32, 0
    %v91 = vsel %vm41, %v33, 0
    %93 = vmatpush.xpose.msra.mxu0 %v91
    %94 = vmatpush.xpose.msra.mxu0 %v88
    %95 = vmatpush.xpose.msra.mxu0 %v85
    %96 = vmatpush.xpose.msra.mxu0 %v82
    %97 = vmatpush.xpose.msra.mxu0 %v79
    %98 = vmatpush.xpose.msra.mxu0 %v76
    %99 = vmatpush.xpose.msra.mxu0 %v73
    %100 = vmatpush.xpose.msra.mxu0 %v70
    %101 = vmatpush.xpose.msra.mxu0 %v67
    %102 = vmatpush.xpose.msra.mxu0 %v64
    %103 = vmatpush.xpose.msra.mxu0 %v61
    %104 = vmatpush.xpose.msra.mxu0 %v58
    %105 = vmatpush.xpose.msra.mxu0 %v55
    %106 = vmatpush.xpose.msra.mxu0 %v52
    %107 = vmatpush.xpose.msra.mxu0 %v49
    %108 = vmatpush.xpose.msra.mxu0 %v46
    %109 = vmatmul.f32.gmra.mxu0 %v43
    %v110 = vpop.f32.mrf.mxu0
    %v111 = vadd.f32 %v39, %v110
    %112 = vdwg.mxu0
    %v113 = vrot.slane %v111, 4
    %v114 = vmax.f32 %v111, %v113
    %v115 = vrot.slane %v114, 2
    %v116 = vmax.f32 %v114, %v115
    %v117 = vrot.slane %v116, 1
    %v118 = vmax.f32 %v116, %v117
    %v119 = vsub.f32 %v111, %v118
    %v120 = vmul.f32 %v119, 1.442695
    %v121 = vpow.pop %v120
    %v122 = vrot.slane %v121, 4
    %v123 = vadd.f32 %v121, %v122
    %v124 = vrot.slane %v123, 2
    %v125 = vadd.f32 %v123, %v124
    %v126 = vrot.slane %v125, 1
    %v127 = vadd.f32 %v125, %v126
    %v128 = vrcp.pop %v127
    %v129 = vmul.f32 %v127, %v128
    %v130 = vsub.f32 1.0, %v129
    %v131 = vmul.f32 %v128, %v130
    %v132 = vadd.f32 %v128, %v131
    %vm133 = vweird.f32 %v127
    %vm134 = vweird.f32 %v128
    %vm135 = vmor %vm133, %vm134
    %v136 = vsel %vm135, %v128, %v132
    %v137 = vand.u32 2147483647, %v127
    %vm138 = vcmp.eq.f32.partialorder %v137, 8.507059e+37
    %v139 = vand.u32 %v127, 2147483648
    %v140 = vor.u32 1.1754944e-38, %v139
    %v141 = vsel %vm138, %v140, %v136
    %v142 = vmul.f32 %v121, %v141
    %v143 = vlaneseq
    %v144 = vshrl.u32 %v143, 7
    %v145 = vrot.slane %v142, 4
    %v146 = vmax.f32 %v142, %v145
    %v147 = vrot.slane %v146, 2
    %v148 = vmax.f32 %v146, %v147
    %v149 = vrot.slane %v148, 1
    %v150 = vmax.f32 %v148, %v149
    %vm151 = vcmp.eq.f32.partialorder %v142, %v150
    %v152 = vsel %vm151, %v144, 8
    %v153 = vrot.slane %v152, 4
    %vm154 = vcmp.lt.s32.totalorder %v152, %v153
    %v155 = vsel %vm154, %v152, %v153
    %v156 = vrot.slane %v155, 2
    %vm157 = vcmp.lt.s32.totalorder %v155, %v156
    %v158 = vsel %vm157, %v155, %v156
    %v159 = vrot.slane %v158, 1
    %vm160 = vcmp.lt.s32.totalorder %v158, %v159
    %v161 = vsel %vm160, %v158, %v159
    %162 = vst [vmem:[#allocation4] sm:$0x1] %v150
    %163 = vst [vmem:[#allocation2] sm:$0x1] %v161
    %vm164 = vcmp.eq.s32.totalorder %v144, %v161
    %v165 = vsel %vm164, -inf, %v142
    %v166 = vrot.slane %v165, 4
    %v167 = vmax.f32 %v165, %v166
    %v168 = vrot.slane %v167, 2
    %v169 = vmax.f32 %v167, %v168
    %v170 = vrot.slane %v169, 1
    %v171 = vmax.f32 %v169, %v170
    %vm172 = vcmp.eq.f32.partialorder %v165, %v171
    %v173 = vsel %vm172, %v144, 8
    %v174 = vrot.slane %v173, 4
    %vm175 = vcmp.lt.s32.totalorder %v173, %v174
    %v176 = vsel %vm175, %v173, %v174
    %v177 = vrot.slane %v176, 2
    %vm178 = vcmp.lt.s32.totalorder %v176, %v177
    %v179 = vsel %vm178, %v176, %v177
    %v180 = vrot.slane %v179, 1
    %vm181 = vcmp.lt.s32.totalorder %v179, %v180
    %v182 = vsel %vm181, %v179, %v180
    %183 = vst [vmem:[#allocation4 + $0x1] sm:$0x1] %v171
    %184 = vst [vmem:[#allocation2 + $0x1] sm:$0x1] %v182
    // Predicated region
    $region14: #{tpu_custom_call.1} parent=1 // pred_check
      _
    $region15: #{tpu_custom_call.1} parent=1 // pred_check_branch
      %186 = sbr.rel (0) target = $region17
    $region16: #{tpu_custom_call.1} parent=1 // pred_region
      %188 = vsyncadd [#allocation3], 0
      %s190 = sshll.u32 [#allocation2], 4
      %s191 = int_to_ptr.vmem [resolvable:$true] %s190
      %s192 = sshll.u32 %s3, 4
      %s193 = int_to_ptr.hbm [resolvable:$true] %s192
      %195 = dma.vmem_to_hbm [thread:$0]  %s191, 32, %s193, [#allocation3]
    $region17: #{tpu_custom_call.1} parent=1 // pred_fallthru
      _
    // Predicated region
    $region18: #{tpu_custom_call.1} parent=1 // pred_check
      _
    $region19: #{tpu_custom_call.1} parent=1 // pred_check_branch
      %197 = sbr.rel (0) target = $region21
    $region20: #{tpu_custom_call.1} parent=1 // pred_region
      %199 = vsyncadd [#allocation5], 0
      %s201 = sshll.u32 [#allocation4], 4
      %s202 = int_to_ptr.vmem [resolvable:$true] %s201
      %s203 = sshll.u32 %s4, 4
      %s204 = int_to_ptr.hbm [resolvable:$true] %s203
      %206 = dma.vmem_to_hbm [thread:$0]  %s202, 32, %s204, [#allocation5]
    $region21: #{tpu_custom_call.1} parent=1 // pred_fallthru
      _
    // Predicated region
    $region22: #{tpu_custom_call.1} parent=1 // pred_check
      _
    $region23: #{tpu_custom_call.1} parent=1 // pred_check_branch
      %208 = sbr.rel (0) target = $region25
    $region24: #{tpu_custom_call.1} parent=1 // pred_region
      %210 = dma.done [#allocation3], 32
    $region25: #{tpu_custom_call.1} parent=1 // pred_fallthru
      _
    // Predicated region
    $region26: #{tpu_custom_call.1} parent=1 // pred_check
      _
    $region27: #{tpu_custom_call.1} parent=1 // pred_check_branch
      %212 = sbr.rel (0) target = $region29
    $region28: #{tpu_custom_call.1} parent=1 // pred_region
      %214 = dma.done [#allocation5], 32
    $region29: #{tpu_custom_call.1} parent=1 // pred_fallthru
      _
    %215 = vsyncpa [#allocation3], 1
    %216 = vsyncpa [#allocation5], 1

</llo_original>
